<compile_context>
chip_gen: v7x
topology: tpu7x:2x2x1
jax: 0.10.0
libtpu: 0.0.40
codegen_flags: <defaults>
</compile_context>

<pallas_src>
import functools

import jax
import jax.numpy as jnp
from jax import lax
from jax.experimental import pallas as pl
from jax.experimental.pallas import tpu as pltpu

_LANES = 128
_ACC_ROWS_DEFAULT = 256      # fixed accumulator height (128 KiB f32)
_MAX_BLOCK_ROWS = 8192       # 8192 x 128 f32 = 4 MiB per input block


def _rmse_partial_kernel(pred_ref, true_ref, out_ref, acc_ref, *,
                         rows, block_rows, acc_rows, steps_per_slice,
                         rows_blocks, may_have_dup):
    p = pl.program_id(0)          # parallel slice (megacore split)
    i = pl.program_id(1)          # reduction step within the slice
    blk = p * steps_per_slice + i

    @pl.when(i == 0)
    def _():
        acc_ref[...] = jnp.zeros_like(acc_ref)

    num_chunks = block_rows // acc_rows           # static
    has_partial_tail = (rows % block_rows) != 0   # static

    def accumulate(masked):
        base_row = blk * block_rows
        total = None
        for j in range(num_chunks):               # static unroll over ref views
            lo = j * acc_rows
            d = (true_ref[lo:lo + acc_rows, :].astype(jnp.float32)
                 - pred_ref[lo:lo + acc_rows, :].astype(jnp.float32))
            sq = d * d
            if masked:
                # Row-index mask (no flat index -> no int32 overflow risk).
                row_ids = lax.broadcasted_iota(jnp.int32, (acc_rows, _LANES), 0)
                valid = (base_row + lo + row_ids) < rows
                sq = jnp.where(valid, sq, jnp.float32(0.0))
            total = sq if total is None else total + sq
        acc_ref[...] += total

    if has_partial_tail:
        # Fast (unmasked) path for every full block; masked path only for the
        # one partial last block.  blk > rows_blocks-1 (duplicate from an
        # uneven parallel split) falls through both and is skipped.
        @pl.when(blk < rows_blocks - 1)
        def _():
            accumulate(masked=False)

        @pl.when(blk == rows_blocks - 1)
        def _():
            accumulate(masked=True)
    elif may_have_dup:
        @pl.when(blk < rows_blocks)
        def _():
            accumulate(masked=False)
    else:
        accumulate(masked=False)

    # Single reduce per slice, written lane-dense as a (1, 128) row.
    @pl.when(i == pl.num_programs(1) - 1)
    def _():
        out_ref[...] = jnp.sum(acc_ref[...], axis=0, keepdims=True)


def _default_num_parallel():
    # Only v7x-class chips have 2 TensorCores per chip; elsewhere the extra
    # grid axis is a wasted serial loop (extra re-zero + possible dup block).
    try:
        kind = jax.devices()[0].device_kind.lower()
    except Exception:
        return 1
    return 2 if ("v7" in kind or "7x" in kind) else 1


def rmse_loss(y_pred, y_true, *, block_rows=None, num_parallel=None):
    assert y_pred.shape == y_true.shape, "shapes must match (no broadcasting)"
    n = y_pred.size

    flat_pred = jnp.ravel(y_pred)
    flat_true = jnp.ravel(y_true)

    rows = n // _LANES
    n_aligned = rows * _LANES

    # Ragged (<128-element) tail handled in plain JAX (avoids a full pad copy).
    if n_aligned < n:
        td = (flat_true[n_aligned:].astype(jnp.float32)
              - flat_pred[n_aligned:].astype(jnp.float32))
        tail_sq = jnp.sum(td * td)
    else:
        tail_sq = jnp.float32(0.0)

    if rows == 0:
        return jnp.sqrt(tail_sq / jnp.float32(n))

    pred2d = flat_pred[:n_aligned].reshape(rows, _LANES)
    true2d = flat_true[:n_aligned].reshape(rows, _LANES)

    # Tile selection: biggest lane-dense tile (per perf review 4096-8192 rows).
    if block_rows is None:
        block_rows = _MAX_BLOCK_ROWS
    block_rows_eff = min(block_rows, _MAX_BLOCK_ROWS, rows)
    if block_rows_eff < rows:
        block_rows_eff = max(8, (block_rows_eff // 8) * 8)   # (8,128) tiling rule

    rows_blocks = pl.cdiv(rows, block_rows_eff)

    if num_parallel is None:
        num_parallel = _default_num_parallel()
    if rows_blocks < 2:
        num_parallel = 1
    steps_per_slice = pl.cdiv(rows_blocks, num_parallel)
    may_have_dup = num_parallel * steps_per_slice > rows_blocks

    # Fixed small accumulator, decoupled from the block size.
    if block_rows_eff >= _ACC_ROWS_DEFAULT and block_rows_eff % _ACC_ROWS_DEFAULT == 0:
        acc_rows = _ACC_ROWS_DEFAULT
    else:
        acc_rows = block_rows_eff

    def in_index_map(p, i):
        blk = p * steps_per_slice + i
        # Clamp so an uneven parallel split never DMAs out of bounds; the
        # duplicate block's contribution is skipped inside the kernel.
        return (jnp.minimum(blk, rows_blocks - 1), 0)

    kernel = functools.partial(
        _rmse_partial_kernel,
        rows=rows,
        block_rows=block_rows_eff,
        acc_rows=acc_rows,
        steps_per_slice=steps_per_slice,
        rows_blocks=rows_blocks,
        may_have_dup=may_have_dup,
    )

    itemsize_p = jnp.dtype(pred2d.dtype).itemsize
    itemsize_t = jnp.dtype(true2d.dtype).itemsize
    block_in_bytes = block_rows_eff * _LANES * (itemsize_p + itemsize_t)
    acc_bytes = acc_rows * _LANES * 4
    # Double-buffered inputs + accumulator + margin; explicit so v5e's 16 MiB
    # default scoped-VMEM limit never gates the tile size.
    vmem_limit = 2 * block_in_bytes + acc_bytes + (2 << 20)
    vmem_limit = int(min(max(vmem_limit, 24 << 20), 48 << 20))

    partials = pl.pallas_call(
        kernel,
        out_shape=jax.ShapeDtypeStruct((1, num_parallel * _LANES), jnp.float32),
        grid_spec=pltpu.PrefetchScalarGridSpec(
            num_scalar_prefetch=0,
            grid=(num_parallel, steps_per_slice),
            in_specs=[
                pl.BlockSpec((block_rows_eff, _LANES), in_index_map),
                pl.BlockSpec((block_rows_eff, _LANES), in_index_map),
            ],
            out_specs=pl.BlockSpec((1, _LANES), lambda p, i: (0, p)),
            scratch_shapes=[pltpu.VMEM((acc_rows, _LANES), jnp.float32)],
        ),
        compiler_params=pltpu.CompilerParams(
            dimension_semantics=("parallel", "arbitrary"),
            vmem_limit_bytes=vmem_limit,
        ),
        cost_estimate=pl.CostEstimate(
            flops=3 * n,
            transcendentals=0,
            bytes_accessed=n_aligned * (itemsize_p + itemsize_t),
        ),
    )(pred2d, true2d)

    total = jnp.sum(partials) + tail_sq
    return jnp.sqrt(total / jnp.float32(n))


if __name__ == "__main__":
    key = jax.random.PRNGKey(0)
    k1, k2, k3, k4 = jax.random.split(key, 4)

    # Primary small example (NCHW-like), lane-aligned: n = 2048.
    shape = (2, 4, 16, 16)
    y_pred = jax.random.normal(k1, shape, dtype=jnp.float32)
    y_true = jax.random.normal(k2, shape, dtype=jnp.float32)

    result = rmse_loss(y_pred, y_true)
    jax.block_until_ready(result)
    ref = jnp.sqrt(jnp.mean((y_true - y_pred) ** 2))
    assert jnp.allclose(result, ref, rtol=1e-5, atol=1e-6), (result, ref)

    # Extra sanity check: misaligned size exercising the masked partial last
    # row-block, the uneven parallel split (duplicate-block skip) and the
    # <128-element tail path.
    n_odd = 130 * 128 + 37
    yp2 = jax.random.normal(k3, (n_odd,), dtype=jnp.float32)
    yt2 = jax.random.normal(k4, (n_odd,), dtype=jnp.float32)
    r2 = rmse_loss(yp2, yt2, block_rows=64, num_parallel=2)
    jax.block_until_ready(r2)
    ref2 = jnp.sqrt(jnp.mean((yt2 - yp2) ** 2))
    assert jnp.allclose(r2, ref2, rtol=1e-5, atol=1e-6), (r2, ref2)

    print("KERNEL_OK")
</pallas_src>

<mosaic_0001>
module attributes {stable_mosaic.version = 11 : i64} {
  func.func @_rmse_partial_kernel(%arg0: i32, %arg1: i32, %arg2: memref<16x128xf32, #tpu.memory_space<vmem>>, %arg3: memref<16x128xf32, #tpu.memory_space<vmem>>, %arg4: memref<1x128xf32, #tpu.memory_space<vmem>>, %arg5: memref<16x128xf32, #tpu.memory_space<vmem>>) attributes {dimension_semantics = [#tpu.dimension_semantics<parallel>, #tpu.dimension_semantics<arbitrary>], iteration_bounds = array<i64: 1, 1>, scalar_prefetch = 0 : i64, scratch_operands = 1 : i64, tpu.core_type = #tpu.core_type<tc>, window_params = [{transform_indices = @transform_0, window_bounds = array<i64: 16, 128>}, {transform_indices = @transform_1, window_bounds = array<i64: 16, 128>}, {transform_indices = @transform_2, window_bounds = array<i64: 1, 128>}]} {
    %c0_i32 = arith.constant 0 : i32
    %0 = arith.cmpi eq, %arg1, %c0_i32 : i32
    %1 = arith.extui %0 : i1 to i32
    %c0_i32_0 = arith.constant 0 : i32
    %2 = arith.cmpi ne, %1, %c0_i32_0 : i32
    scf.if %2 {
      %cst = arith.constant 0.000000e+00 : f32
      %13 = vector.broadcast %cst : f32 to vector<16x128xf32>
      %c0_10 = arith.constant 0 : index
      %c0_11 = arith.constant 0 : index
      %14 = vector.load %arg5[%c0_10, %c0_11] : memref<16x128xf32, #tpu.memory_space<vmem>>, vector<16x128xf32>
      tpu.vector_store %arg5[%c0_10, %c0_11], %13 {strides = array<i32>} : memref<16x128xf32, #tpu.memory_space<vmem>>, vector<16x128xf32>,
    } else {
    }
    %c0 = arith.constant 0 : index
    %c0_1 = arith.constant 0 : index
    %3 = vector.load %arg3[%c0, %c0_1] : memref<16x128xf32, #tpu.memory_space<vmem>>, vector<16x128xf32>
    %c0_2 = arith.constant 0 : index
    %c0_3 = arith.constant 0 : index
    %4 = vector.load %arg2[%c0_2, %c0_3] : memref<16x128xf32, #tpu.memory_space<vmem>>, vector<16x128xf32>
    %5 = arith.subf %3, %4 : vector<16x128xf32>
    %6 = arith.mulf %5, %5 : vector<16x128xf32>
    %c0_4 = arith.constant 0 : index
    %c0_5 = arith.constant 0 : index
    %7 = vector.load %arg5[%c0_4, %c0_5] : memref<16x128xf32, #tpu.memory_space<vmem>>, vector<16x128xf32>
    %8 = arith.addf %7, %6 : vector<16x128xf32>
    %c0_6 = arith.constant 0 : index
    %c0_7 = arith.constant 0 : index
    %9 = vector.load %arg5[%c0_6, %c0_7] : memref<16x128xf32, #tpu.memory_space<vmem>>, vector<16x128xf32>
    tpu.vector_store %arg5[%c0_6, %c0_7], %8 {strides = array<i32>} : memref<16x128xf32, #tpu.memory_space<vmem>>, vector<16x128xf32>,
    %c0_i32_8 = arith.constant 0 : i32
    %10 = arith.cmpi eq, %arg1, %c0_i32_8 : i32
    %11 = arith.extui %10 : i1 to i32
    %c0_i32_9 = arith.constant 0 : i32
    %12 = arith.cmpi ne, %11, %c0_i32_9 : i32
    scf.if %12 {
      %c0_10 = arith.constant 0 : index
      %c0_11 = arith.constant 0 : index
      %13 = vector.load %arg5[%c0_10, %c0_11] : memref<16x128xf32, #tpu.memory_space<vmem>>, vector<16x128xf32>
      %cst = arith.constant dense<0.000000e+00> : vector<128xf32>
      %14 = vector.multi_reduction <add>, %13, %cst [0] : vector<16x128xf32> to vector<128xf32>
      %15 = vector.shape_cast %14 : vector<128xf32> to vector<1x128xf32>
      %c0_12 = arith.constant 0 : index
      %c0_13 = arith.constant 0 : index
      %16 = vector.load %arg4[%c0_12, %c0_13] : memref<1x128xf32, #tpu.memory_space<vmem>>, vector<1x128xf32>
      tpu.vector_store %arg4[%c0_12, %c0_13], %15 {strides = array<i32>} : memref<1x128xf32, #tpu.memory_space<vmem>>, vector<1x128xf32>,
    } else {
    }
    return
  }
  func.func @transform_0(%arg0: i32, %arg1: i32) -> (i32, i32) {
    %c1_i32 = arith.constant 1 : i32
    %0 = arith.muli %arg0, %c1_i32 : i32
    %1 = arith.addi %0, %arg1 : i32
    %c0_i32 = arith.constant 0 : i32
    %2 = arith.minsi %1, %c0_i32 : i32
    %c0_i32_0 = arith.constant 0 : i32
    %c0_i32_1 = arith.constant 0 : i32
    return %2, %c0_i32_0 : i32, i32
  }
  func.func @transform_1(%arg0: i32, %arg1: i32) -> (i32, i32) {
    %c1_i32 = arith.constant 1 : i32
    %0 = arith.muli %arg0, %c1_i32 : i32
    %1 = arith.addi %0, %arg1 : i32
    %c0_i32 = arith.constant 0 : i32
    %2 = arith.minsi %1, %c0_i32 : i32
    %c0_i32_0 = arith.constant 0 : i32
    %c0_i32_1 = arith.constant 0 : i32
    return %2, %c0_i32_0 : i32, i32
  }
  func.func @transform_2(%arg0: i32, %arg1: i32) -> (i32, i32) {
    %c0_i32 = arith.constant 0 : i32
    %c0_i32_0 = arith.constant 0 : i32
    return %c0_i32, %arg0 : i32, i32
  }
}

</mosaic_0001>

<llo_original>
// kernel: tpu_custom_call.1
$region0: #{tpu_custom_call.1}
  #allocation0 [shape = 'u32[]', space=smem, size = 0x4, offset = 0x4, fixed_abs, tag = 'smem constant byte address 0x4 - core index']
  #allocation1 [shape = 'u32[144,128]{1,0:T(1,128)}', space=vmem, size = 0x12000, scoped, tag = 'internal scratch']
  #allocation2 [shape = 'f32[16,128]{1,0:T(8,128)}', space=vmem, size = 0x2000, scoped, tag = 'scratch operand']
  %s0 = inlined_call_operand.hbm [shape: f32[16,128], index: 0, kind: input, shape index: {}]
  %s1 = inlined_call_operand.hbm [shape: f32[16,128], index: 1, kind: input, shape index: {}]
  %s2 = inlined_call_operand.hbm [shape: f32[1,128], index: 2, kind: output, shape index: {}]
  %s3 = sld [smem:[#allocation0]]
  $region34: #{tpu_custom_call.1} parent=0
    _
  %s5 = ssub.s32 1, %s3
  %s6 = scalar_select 0, %s5, %s3
  $region1: #{tpu_custom_call.1} parent=0
    #allocation3 [shape = 'u8[8192]{0}', space=vmem, size = 0x2000, scoped, tag = 'input window, operand 0, single buffered']
    #allocation4 [shape = 's32[1]{0}', space=sflag, size = 0x4, scoped, tag = 'scoped memory for tpu_custom_call.1']
    #allocation5 [shape = 's32[1]{0}', space=sflag, size = 0x4, scoped, tag = 'scoped memory for tpu_custom_call.1']
    #allocation6 [shape = 'u8[8192]{0}', space=vmem, size = 0x2000, scoped, tag = 'input window, operand 1, single buffered']
    #allocation7 [shape = 's32[1]{0}', space=sflag, size = 0x4, scoped, tag = 'scoped memory for tpu_custom_call.1']
    #allocation8 [shape = 'u8[512]{0}', space=vmem, size = 0x400, scoped, tag = 'output window, operand 0, single buffered']
    %7 = vsyncpa [#allocation4], 0
    %8 = vsyncpa [#allocation7], 0
    %9 = vsyncpa [#allocation5], 0
    // Predicated region
    $region2: #{tpu_custom_call.1} parent=1 // pred_check
      _
    $region3: #{tpu_custom_call.1} parent=1 // pred_check_branch
      %11 = sbr.rel (0) target = $region5
    $region4: #{tpu_custom_call.1} parent=1 // pred_region
      %s12 = sadd.s32 0, 0
      %p13 = scmp.lt.s32.totalorder %s12, 0
      %s14 = scalar_select %p13, %s12, 0
      %s15 = smul.u32 2, %s14
      %s17 = ssub.s32 256, 256
      %18 = vsyncadd [#allocation4], %s17
      %s19 = smul.addr %s15, 128
      %s20 = scalar_lea.hbm %s0, %s19
      %s21 = sshll.u32 [#allocation3], 4
      %s22 = int_to_ptr.vmem [resolvable:$true] %s21
      %27 = dma.hbm_to_vmem [thread:$0]  %s20, 256, %s22, [#allocation4], 128, 128, 8
    $region5: #{tpu_custom_call.1} parent=1 // pred_fallthru
      _
    // Predicated region
    $region6: #{tpu_custom_call.1} parent=1 // pred_check
      _
    $region7: #{tpu_custom_call.1} parent=1 // pred_check_branch
      %29 = sbr.rel (0) target = $region9
    $region8: #{tpu_custom_call.1} parent=1 // pred_region
      %s30 = sadd.s32 0, 0
      %p31 = scmp.lt.s32.totalorder %s30, 0
      %s32 = scalar_select %p31, %s30, 0
      %s33 = smul.u32 2, %s32
      %s35 = ssub.s32 256, 256
      %36 = vsyncadd [#allocation7], %s35
      %s37 = smul.addr %s33, 128
      %s38 = scalar_lea.hbm %s1, %s37
      %s39 = sshll.u32 [#allocation6], 4
      %s40 = int_to_ptr.vmem [resolvable:$true] %s39
      %45 = dma.hbm_to_vmem [thread:$0]  %s38, 256, %s40, [#allocation7], 128, 128, 8
    $region9: #{tpu_custom_call.1} parent=1 // pred_fallthru
      _
    // Predicated region
    $region10: #{tpu_custom_call.1} parent=1 // pred_check
      _
    $region11: #{tpu_custom_call.1} parent=1 // pred_check_branch
      %47 = sbr.rel (0) target = $region13
    $region12: #{tpu_custom_call.1} parent=1 // pred_region
      %48 = dma.done [#allocation4], 256
    $region13: #{tpu_custom_call.1} parent=1 // pred_fallthru
      _
    // Predicated region
    $region14: #{tpu_custom_call.1} parent=1 // pred_check
      _
    $region15: #{tpu_custom_call.1} parent=1 // pred_check_branch
      %50 = sbr.rel (0) target = $region17
    $region16: #{tpu_custom_call.1} parent=1 // pred_region
      %51 = dma.done [#allocation7], 256
    $region17: #{tpu_custom_call.1} parent=1 // pred_fallthru
      _
    %s52 = sadd.s32 0, 0
    %p53 = scmp.lt.s32.totalorder %s52, 0
    %s54 = scalar_select %p53, %s52, 0
    %s55 = smul.u32 2, %s54
    %s56 = sadd.s32 0, 0
    %p57 = scmp.lt.s32.totalorder %s56, 0
    %s58 = scalar_select %p57, %s56, 0
    %s59 = smul.u32 2, %s58
    %p60 = scmp.eq.s32.totalorder 0, 0
    // Predicated region
    $region18: #{tpu_custom_call.1} parent=1 // pred_check
      %p61 = pneg %p60
    $region19: #{tpu_custom_call.1} parent=1 // pred_check_branch
      %63 = sbr.rel (%p61) target = $region21
    $region20: #{tpu_custom_call.1} parent=1 // pred_region
      %64 = vst [vmem:[#allocation2] sm:$0xff] 0.0
      %65 = vst [vmem:[#allocation2 + $0x8] sm:$0xff] 0.0
    $region21: #{tpu_custom_call.1} parent=1 // pred_fallthru
      _
    %v66 = vld [vmem:[#allocation6] sm:$0xff]
    %v67 = vld [vmem:[#allocation6 + $0x8] sm:$0xff]
    %v68 = vld [vmem:[#allocation3] sm:$0xff]
    %v69 = vld [vmem:[#allocation3 + $0x8] sm:$0xff]
    %v70 = vsub.f32 %v66, %v68
    %v71 = vsub.f32 %v67, %v69
    %v72 = vmul.f32 %v70, %v70
    %v73 = vmul.f32 %v71, %v71
    %v74 = vld [vmem:[#allocation2] sm:$0xff]
    %v75 = vld [vmem:[#allocation2 + $0x8] sm:$0xff]
    %v76 = vadd.f32 %v74, %v72
    %v77 = vadd.f32 %v75, %v73
    %78 = vst [vmem:[#allocation2] sm:$0xff] %v76
    %79 = vst [vmem:[#allocation2 + $0x8] sm:$0xff] %v77
    // Predicated region
    $region22: #{tpu_custom_call.1} parent=1 // pred_check
      %p80 = pneg %p60
    $region23: #{tpu_custom_call.1} parent=1 // pred_check_branch
      %82 = sbr.rel (%p80) target = $region25
    $region24: #{tpu_custom_call.1} parent=1 // pred_region
      %v83 = vld [vmem:[#allocation2] sm:$0xff]
      %v84 = vld [vmem:[#allocation2 + $0x8] sm:$0xff]
      %v85 = vadd.f32 %v83, %v84
      %v86 = vrot.slane %v85, 4
      %v87 = vadd.f32 %v85, %v86
      %v88 = vrot.slane %v87, 2
      %v89 = vadd.f32 %v87, %v88
      %v90 = vrot.slane %v89, 1
      %v91 = vadd.f32 %v89, %v90
      %92 = vst [vmem:[#allocation8] sm:$0x1] %v91
    $region25: #{tpu_custom_call.1} parent=1 // pred_fallthru
      _
    // Predicated region
    $region26: #{tpu_custom_call.1} parent=1 // pred_check
      _
    $region27: #{tpu_custom_call.1} parent=1 // pred_check_branch
      %94 = sbr.rel (0) target = $region29
    $region28: #{tpu_custom_call.1} parent=1 // pred_region
      %s96 = ssub.s32 16, 16
      %97 = vsyncadd [#allocation5], %s96
      %s99 = sshll.u32 [#allocation8], 4
      %s100 = int_to_ptr.vmem [resolvable:$true] %s99
      %102 = dma.vmem_to_hbm [thread:$0]  %s100, 16, %s2, [#allocation5]
    $region29: #{tpu_custom_call.1} parent=1 // pred_fallthru
      _
    // Predicated region
    $region30: #{tpu_custom_call.1} parent=1 // pred_check
      _
    $region31: #{tpu_custom_call.1} parent=1 // pred_check_branch
      %104 = sbr.rel (0) target = $region33
    $region32: #{tpu_custom_call.1} parent=1 // pred_region
      %105 = dma.done [#allocation5], 16
    $region33: #{tpu_custom_call.1} parent=1 // pred_fallthru
      _
    %106 = vsyncpa [#allocation4], 1
    %107 = vsyncpa [#allocation7], 1
    %108 = vsyncpa [#allocation5], 1

</llo_original>
